<compile_context>
chip_gen: v7x
topology: tpu7x:2x2x1
jax: 0.10.0
libtpu: 0.0.40
codegen_flags: <defaults>
</compile_context>

<pallas_src>
import jax
import jax.numpy as jnp
from jax import lax
from jax.experimental import pallas as pl
from jax.experimental.pallas import tpu as pltpu

EPS = 1e-12          # F.normalize default eps
LANE = 128           # TPU lane width -> lane-dense output slab
MAX_TM = 128         # batch tile cap


def _finetuned_kernel(imp_ref, wi_ref, bi_ref, wc_ref, bc_ref, logits_ref):
    # Imp encoder (MXU matmul, f32 accumulation) + bias.
    i_emb = jnp.dot(imp_ref[...], wi_ref[...],
                    preferred_element_type=jnp.float32) + bi_ref[...]

    # F.normalize(p=2, dim=1): x / max(||x||, eps)  ==  x * rsqrt(max(||x||^2, eps^2))
    sumsq = jnp.sum(i_emb * i_emb, axis=1, keepdims=True)
    inv = lax.rsqrt(jnp.maximum(sumsq, EPS * EPS))
    i_out = i_emb * inv

    # Classifier decoder -> lane-dense (TM, 128) slab (valid logits in [:, :C]).
    logits_ref[...] = jnp.dot(i_out, wc_ref[...],
                              preferred_element_type=jnp.float32) + bc_ref[...]


def _round_up(x, m):
    return ((x + m - 1) // m) * m


def finetuned_forward(text_input, imp_input, params):
    """Returns classification_logits, matching FineTunedModel.forward.

    text_input is accepted for API parity with the PyTorch module but is not
    used: FineTunedModel returns only the classifier output on the imp branch.
    """
    del text_input  # dead w.r.t. the returned value

    imp = imp_input.astype(jnp.float32)
    B, D_imp = imp.shape
    E = params["wi"].shape[1]
    C = params["wc"].shape[1]

    # Batch tiling: sublane-aligned, capped at MAX_TM.
    B_pad8 = _round_up(B, 8)
    TM = min(B_pad8, MAX_TM)
    B_pad = _round_up(B_pad8, TM)
    if B_pad != B:
        imp = jnp.pad(imp, ((0, B_pad - B), (0, 0)))

    # Lane-dense classifier: pad output features to 128 lanes.
    C_pad = _round_up(C, LANE)
    wc = jnp.pad(params["wc"].astype(jnp.float32), ((0, 0), (0, C_pad - C)))
    bc = jnp.pad(params["bc"].astype(jnp.float32), ((0, 0), (0, C_pad - C)))
    wi = params["wi"].astype(jnp.float32)
    bi = params["bi"].astype(jnp.float32)

    grid = (B_pad // TM,)

    flops = 2 * B_pad * (D_imp * E + E * C_pad)
    bytes_accessed = 4 * (B_pad * D_imp + D_imp * E + E
                          + E * C_pad + C_pad + B_pad * C_pad)

    logits_pad = pl.pallas_call(
        _finetuned_kernel,
        grid=grid,
        in_specs=[
            pl.BlockSpec((TM, D_imp), lambda i: (i, 0)),   # imp tile (pipelined)
            pl.BlockSpec((D_imp, E), lambda i: (0, 0)),    # wi (VMEM-resident)
            pl.BlockSpec((1, E), lambda i: (0, 0)),        # bi
            pl.BlockSpec((E, C_pad), lambda i: (0, 0)),    # wc (padded, resident)
            pl.BlockSpec((1, C_pad), lambda i: (0, 0)),    # bc (padded)
        ],
        out_specs=pl.BlockSpec((TM, C_pad), lambda i: (i, 0)),
        out_shape=jax.ShapeDtypeStruct((B_pad, C_pad), jnp.float32),
        compiler_params=pltpu.CompilerParams(
            dimension_semantics=("parallel",),
            vmem_limit_bytes=32 * 1024 * 1024,
        ),
        cost_estimate=pl.CostEstimate(
            flops=flops,
            transcendentals=B_pad,            # one rsqrt per row
            bytes_accessed=bytes_accessed,
        ),
    )(imp, wi, bi, wc, bc)

    return logits_pad[:B, :C]


def init_params(key, d_text, d_imp, embedding_dim, num_classes):
    # wt/bt kept only so the parameter set mirrors the full PyTorch module;
    # they do not affect the returned logits and are not sent to the kernel.
    k = jax.random.split(key, 6)
    scale = 0.05
    return {
        "wt": scale * jax.random.normal(k[0], (d_text, embedding_dim), jnp.float32),
        "bt": scale * jax.random.normal(k[1], (1, embedding_dim), jnp.float32),
        "wi": scale * jax.random.normal(k[2], (d_imp, embedding_dim), jnp.float32),
        "bi": scale * jax.random.normal(k[3], (1, embedding_dim), jnp.float32),
        "wc": scale * jax.random.normal(k[4], (embedding_dim, num_classes), jnp.float32),
        "bc": scale * jax.random.normal(k[5], (1, num_classes), jnp.float32),
    }


def _reference_logits(imp_input, params):
    i_emb = imp_input.astype(jnp.float32) @ params["wi"] + params["bi"]
    norm = jnp.sqrt(jnp.sum(i_emb * i_emb, axis=1, keepdims=True))
    i_out = i_emb / jnp.maximum(norm, EPS)
    return i_out @ params["wc"] + params["bc"]


if __name__ == "__main__":
    D_TEXT = 32
    D_IMP = 32
    EMBEDDING_DIM = 32
    NUM_CLASSES = 10

    key = jax.random.PRNGKey(0)
    k_text, k_imp, k_params = jax.random.split(key, 3)
    params = init_params(k_params, D_TEXT, D_IMP, EMBEDDING_DIM, NUM_CLASSES)

    ok = True
    for B in (8, 10):  # 10 exercises the batch-padding / slicing path
        kt, ki = jax.random.split(jax.random.fold_in(k_imp, B))
        text_input = jax.random.normal(kt, (B, D_TEXT), jnp.float32)
        imp_input = jax.random.normal(ki, (B, D_IMP), jnp.float32)

        logits = finetuned_forward(text_input, imp_input, params)
        jax.block_until_ready(logits)
        assert logits.shape == (B, NUM_CLASSES)

        ref = _reference_logits(imp_input, params)
        ok = ok and bool(jnp.allclose(logits, ref, atol=1e-5, rtol=1e-5))

    assert ok
    print("KERNEL_OK")
</pallas_src>

<mosaic_0001>
module attributes {stable_mosaic.version = 11 : i64} {
  func.func @_finetuned_kernel(%arg0: i32, %arg1: memref<8x32xf32, #tpu.memory_space<vmem>>, %arg2: memref<32x32xf32, #tpu.memory_space<vmem>>, %arg3: memref<1x32xf32, #tpu.memory_space<vmem>>, %arg4: memref<32x128xf32, #tpu.memory_space<vmem>>, %arg5: memref<1x128xf32, #tpu.memory_space<vmem>>, %arg6: memref<8x128xf32, #tpu.memory_space<vmem>>) attributes {dimension_semantics = [#tpu.dimension_semantics<parallel>], iteration_bounds = array<i64: 1>, scalar_prefetch = 0 : i64, scratch_operands = 0 : i64, tpu.core_type = #tpu.core_type<tc>, window_params = [{transform_indices = @transform_0, window_bounds = array<i64: 8, 32>}, {pipeline_mode = #tpu.pipeline_mode<synchronous>, transform_indices = @transform_1, window_bounds = array<i64: 32, 32>}, {pipeline_mode = #tpu.pipeline_mode<synchronous>, transform_indices = @transform_2, window_bounds = array<i64: 1, 32>}, {pipeline_mode = #tpu.pipeline_mode<synchronous>, transform_indices = @transform_3, window_bounds = array<i64: 32, 128>}, {pipeline_mode = #tpu.pipeline_mode<synchronous>, transform_indices = @transform_4, window_bounds = array<i64: 1, 128>}, {transform_indices = @transform_5, window_bounds = array<i64: 8, 128>}]} {
    %c0 = arith.constant 0 : index
    %c0_0 = arith.constant 0 : index
    %0 = vector.load %arg1[%c0, %c0_0] : memref<8x32xf32, #tpu.memory_space<vmem>>, vector<8x32xf32>
    %c0_1 = arith.constant 0 : index
    %c0_2 = arith.constant 0 : index
    %1 = vector.load %arg2[%c0_1, %c0_2] : memref<32x32xf32, #tpu.memory_space<vmem>>, vector<32x32xf32>
    %cst = arith.constant dense<0.000000e+00> : vector<8x32xf32>
    %2 = tpu.matmul %0, %1, %cst {dimension_numbers = #tpu.dot_dimension_numbers<[1], [0], [0], [1], [0, 0, 1, 1], [], []>} : vector<8x32xf32>, vector<32x32xf32>, vector<8x32xf32> -> vector<8x32xf32>
    %c0_3 = arith.constant 0 : index
    %c0_4 = arith.constant 0 : index
    %3 = vector.load %arg3[%c0_3, %c0_4] : memref<1x32xf32, #tpu.memory_space<vmem>>, vector<1x32xf32>
    %4 = vector.broadcast %3 : vector<1x32xf32> to vector<8x32xf32>
    %5 = arith.addf %2, %4 : vector<8x32xf32>
    %6 = arith.mulf %5, %5 : vector<8x32xf32>
    %cst_5 = arith.constant dense<0.000000e+00> : vector<8xf32>
    %7 = vector.multi_reduction <add>, %6, %cst_5 [1] : vector<8x32xf32> to vector<8xf32>
    %8 = vector.shape_cast %7 : vector<8xf32> to vector<8x1xf32>
    %cst_6 = arith.constant 1.000000e-24 : f32
    %9 = vector.broadcast %cst_6 : f32 to vector<8x1xf32>
    %10 = arith.maximumf %8, %9 : vector<8x1xf32>
    %11 = math.rsqrt %10 : vector<8x1xf32>
    %12 = vector.broadcast %11 : vector<8x1xf32> to vector<8x32xf32>
    %13 = arith.mulf %5, %12 : vector<8x32xf32>
    %c0_7 = arith.constant 0 : index
    %c0_8 = arith.constant 0 : index
    %14 = vector.load %arg4[%c0_7, %c0_8] : memref<32x128xf32, #tpu.memory_space<vmem>>, vector<32x128xf32>
    %cst_9 = arith.constant dense<0.000000e+00> : vector<8x128xf32>
    %15 = tpu.matmul %13, %14, %cst_9 {dimension_numbers = #tpu.dot_dimension_numbers<[1], [0], [0], [1], [0, 0, 1, 1], [], []>} : vector<8x32xf32>, vector<32x128xf32>, vector<8x128xf32> -> vector<8x128xf32>
    %c0_10 = arith.constant 0 : index
    %c0_11 = arith.constant 0 : index
    %16 = vector.load %arg5[%c0_10, %c0_11] : memref<1x128xf32, #tpu.memory_space<vmem>>, vector<1x128xf32>
    %17 = vector.broadcast %16 : vector<1x128xf32> to vector<8x128xf32>
    %18 = arith.addf %15, %17 : vector<8x128xf32>
    %c0_12 = arith.constant 0 : index
    %c0_13 = arith.constant 0 : index
    %19 = vector.load %arg6[%c0_12, %c0_13] : memref<8x128xf32, #tpu.memory_space<vmem>>, vector<8x128xf32>
    tpu.vector_store %arg6[%c0_12, %c0_13], %18 {strides = array<i32>} : memref<8x128xf32, #tpu.memory_space<vmem>>, vector<8x128xf32>,
    return
  }
  func.func @transform_0(%arg0: i32) -> (i32, i32) {
    %c0_i32 = arith.constant 0 : i32
    %c0_i32_0 = arith.constant 0 : i32
    return %arg0, %c0_i32 : i32, i32
  }
  func.func @transform_1(%arg0: i32) -> (i32, i32) {
    %c0_i32 = arith.constant 0 : i32
    %c0_i32_0 = arith.constant 0 : i32
    %c0_i32_1 = arith.constant 0 : i32
    return %c0_i32, %c0_i32_0 : i32, i32
  }
  func.func @transform_2(%arg0: i32) -> (i32, i32) {
    %c0_i32 = arith.constant 0 : i32
    %c0_i32_0 = arith.constant 0 : i32
    %c0_i32_1 = arith.constant 0 : i32
    return %c0_i32, %c0_i32_0 : i32, i32
  }
  func.func @transform_3(%arg0: i32) -> (i32, i32) {
    %c0_i32 = arith.constant 0 : i32
    %c0_i32_0 = arith.constant 0 : i32
    %c0_i32_1 = arith.constant 0 : i32
    return %c0_i32, %c0_i32_0 : i32, i32
  }
  func.func @transform_4(%arg0: i32) -> (i32, i32) {
    %c0_i32 = arith.constant 0 : i32
    %c0_i32_0 = arith.constant 0 : i32
    %c0_i32_1 = arith.constant 0 : i32
    return %c0_i32, %c0_i32_0 : i32, i32
  }
  func.func @transform_5(%arg0: i32) -> (i32, i32) {
    %c0_i32 = arith.constant 0 : i32
    %c0_i32_0 = arith.constant 0 : i32
    return %arg0, %c0_i32 : i32, i32
  }
}

</mosaic_0001>

<llo_original>
// kernel: tpu_custom_call.1
$region0: #{tpu_custom_call.1}
  #allocation0 [shape = 'u32[]', space=smem, size = 0x4, offset = 0x4, fixed_abs, tag = 'smem constant byte address 0x4 - core index']
  #allocation1 [shape = 'u32[144,128]{1,0:T(1,128)}', space=vmem, size = 0x12000, scoped, tag = 'internal scratch']
  %s0 = inlined_call_operand.hbm [shape: f32[8,32], index: 0, kind: input, shape index: {}]
  %s1 = inlined_call_operand.hbm [shape: f32[32,32], index: 1, kind: input, shape index: {}]
  %s2 = inlined_call_operand.vmem [shape: f32[1,32], index: 2, kind: input, shape index: {}]
  %s3 = inlined_call_operand.hbm [shape: f32[32,128], index: 3, kind: input, shape index: {}]
  %s4 = inlined_call_operand.vmem [shape: f32[1,128], index: 4, kind: input, shape index: {}]
  %s5 = inlined_call_operand.hbm [shape: f32[8,128], index: 5, kind: output, shape index: {}]
  %s6 = sld [smem:[#allocation0]]
  $region42: #{tpu_custom_call.1} parent=0
    _
  %s8 = ssub.s32 1, %s6
  %s9 = scalar_select 0, %s8, %s6
  $region1: #{tpu_custom_call.1} parent=0
    #allocation2 [shape = 'u8[4096]{0}', space=vmem, size = 0x1000, scoped, tag = 'input window, operand 0, single buffered']
    #allocation3 [shape = 's32[1]{0}', space=sflag, size = 0x4, scoped, tag = 'scoped memory for tpu_custom_call.1']
    #allocation4 [shape = 's32[1]{0}', space=sflag, size = 0x4, scoped, tag = 'scoped memory for tpu_custom_call.1']
    #allocation5 [shape = 'u8[16384]{0}', space=vmem, size = 0x4000, scoped, tag = 'input window, operand 1, single buffered']
    #allocation6 [shape = 's32[1]{0}', space=sflag, size = 0x4, scoped, tag = 'scoped memory for tpu_custom_call.1']
    #allocation7 [shape = 'u8[16384]{0}', space=vmem, size = 0x4000, scoped, tag = 'input window, operand 3, single buffered']
    #allocation8 [shape = 'u8[4096]{0}', space=vmem, size = 0x1000, scoped, tag = 'output window, operand 0, single buffered']
    %10 = vsyncpa [#allocation3], 0
    %11 = vsyncpa [#allocation6], 0
    %12 = vsyncpa [#allocation4], 0
    // Predicated region
    $region2: #{tpu_custom_call.1} parent=1 // pred_check
      _
    $region3: #{tpu_custom_call.1} parent=1 // pred_check_branch
      %14 = sbr.rel (0) target = $region5
    $region4: #{tpu_custom_call.1} parent=1 // pred_region
      %s16 = ssub.s32 128, 128
      %17 = vsyncadd [#allocation3], %s16
      %s19 = sshll.u32 [#allocation2], 4
      %s20 = int_to_ptr.vmem [resolvable:$true] %s19
      %22 = dma.hbm_to_vmem [thread:$0]  %s0, 128, %s20, [#allocation3]
    $region5: #{tpu_custom_call.1} parent=1 // pred_fallthru
      _
    // Predicated region
    $region6: #{tpu_custom_call.1} parent=1 // pred_check
      _
    $region7: #{tpu_custom_call.1} parent=1 // pred_check_branch
      %24 = sbr.rel (0) target = $region9
    $region8: #{tpu_custom_call.1} parent=1 // pred_region
      %s26 = ssub.s32 512, 512
      %27 = vsyncadd [#allocation6], %s26
      %s28 = sshll.u32 [#allocation5], 4
      %s29 = int_to_ptr.vmem [resolvable:$true] %s28
      %34 = dma.hbm_to_vmem [thread:$0]  %s1, 512, %s29, [#allocation6], 128, 128, 8
    $region9: #{tpu_custom_call.1} parent=1 // pred_fallthru
      _
    // Predicated region
    $region10: #{tpu_custom_call.1} parent=1 // pred_check
      _
    $region11: #{tpu_custom_call.1} parent=1 // pred_check_branch
      %36 = sbr.rel (0) target = $region13
    $region12: #{tpu_custom_call.1} parent=1 // pred_region
      _
    $region13: #{tpu_custom_call.1} parent=1 // pred_fallthru
      _
    // Predicated region
    $region14: #{tpu_custom_call.1} parent=1 // pred_check
      _
    $region15: #{tpu_custom_call.1} parent=1 // pred_check_branch
      %38 = sbr.rel (0) target = $region17
    $region16: #{tpu_custom_call.1} parent=1 // pred_region
      %s40 = ssub.s32 512, 512
      %41 = vsyncadd [#allocation6], %s40
      %s42 = sshll.u32 [#allocation7], 4
      %s43 = int_to_ptr.vmem [resolvable:$true] %s42
      %48 = dma.hbm_to_vmem [thread:$0]  %s3, 512, %s43, [#allocation6], 128, 128, 8
    $region17: #{tpu_custom_call.1} parent=1 // pred_fallthru
      _
    // Predicated region
    $region18: #{tpu_custom_call.1} parent=1 // pred_check
      _
    $region19: #{tpu_custom_call.1} parent=1 // pred_check_branch
      %50 = sbr.rel (0) target = $region21
    $region20: #{tpu_custom_call.1} parent=1 // pred_region
      _
    $region21: #{tpu_custom_call.1} parent=1 // pred_fallthru
      _
    // Predicated region
    $region22: #{tpu_custom_call.1} parent=1 // pred_check
      _
    $region23: #{tpu_custom_call.1} parent=1 // pred_check_branch
      %52 = sbr.rel (0) target = $region25
    $region24: #{tpu_custom_call.1} parent=1 // pred_region
      %53 = dma.done [#allocation3], 128
    $region25: #{tpu_custom_call.1} parent=1 // pred_fallthru
      _
    // Predicated region
    $region26: #{tpu_custom_call.1} parent=1 // pred_check
      _
    $region27: #{tpu_custom_call.1} parent=1 // pred_check_branch
      %55 = sbr.rel (0) target = $region29
    $region28: #{tpu_custom_call.1} parent=1 // pred_region
      %56 = dma.done [#allocation6], 512
    $region29: #{tpu_custom_call.1} parent=1 // pred_fallthru
      _
    // Predicated region
    $region30: #{tpu_custom_call.1} parent=1 // pred_check
      _
    $region31: #{tpu_custom_call.1} parent=1 // pred_check_branch
      %58 = sbr.rel (0) target = $region33
    $region32: #{tpu_custom_call.1} parent=1 // pred_region
      %59 = dma.done [#allocation6], 512
    $region33: #{tpu_custom_call.1} parent=1 // pred_fallthru
      _
    %v60 = vld [vmem:[#allocation2] sm:$0xff]
    %v61 = vld [vmem:[#allocation5] sm:$0xff]
    %v62 = vld [vmem:[#allocation5 + $0x8] sm:$0xff]
    %v63 = vld [vmem:[#allocation5 + $0x10] sm:$0xff]
    %v64 = vld [vmem:[#allocation5 + $0x18] sm:$0xff]
    %v65 = vld [vmem:[%s2] sm:$0x1]
    %v67 = vlaneseq
    %v68 = vshrl.u32 %v67, 7
    %v69 = vsub.s32 0, %v68
    %v70 = vrot.slane %v65, %v69
    %vm72 = vcmask 261120
    %v74 = vsel %vm72, %v60, 0
    %76 = vmatprep.subr.mxu0 0.0
    %77 = vmatpush1.msra.mxu0 %v61
    %78 = vmatprep.subr.mxu0 0.0
    %79 = vmatpush1.msra.mxu0 %v62
    %80 = vmatprep.subr.mxu0 0.0
    %81 = vmatpush1.msra.mxu0 %v63
    %82 = vmatprep.subr.mxu0 0.0
    %83 = vmatpush1.msra.mxu0 %v64
    %84 = vmatprep.subr.mxu0 0.0
    %85 = vmatpush1.msra.mxu0 0.0
    %86 = vmatprep.subr.mxu0 0.0
    %87 = vmatpush1.msra.mxu0 0.0
    %88 = vmatprep.subr.mxu0 0.0
    %89 = vmatpush1.msra.mxu0 0.0
    %90 = vmatprep.subr.mxu0 0.0
    %91 = vmatpush1.msra.mxu0 0.0
    %92 = vmatprep.subr.mxu0 0.0
    %93 = vmatpush1.msra.mxu0 0.0
    %94 = vmatprep.subr.mxu0 0.0
    %95 = vmatpush1.msra.mxu0 0.0
    %96 = vmatprep.subr.mxu0 0.0
    %97 = vmatpush1.msra.mxu0 0.0
    %98 = vmatprep.subr.mxu0 0.0
    %99 = vmatpush1.msra.mxu0 0.0
    %100 = vmatprep.subr.mxu0 0.0
    %101 = vmatpush1.msra.mxu0 0.0
    %102 = vmatprep.subr.mxu0 0.0
    %103 = vmatpush1.msra.mxu0 0.0
    %104 = vmatprep.subr.mxu0 0.0
    %105 = vmatpush1.msra.mxu0 0.0
    %106 = vmatprep.subr.mxu0 0.0
    %107 = vmatpush1.msra.mxu0 0.0
    %108 = vmatprep.subr.mxu0 0.0
    %109 = vmatpush1.msra.mxu0 0.0
    %110 = vmatprep.subr.mxu0 0.0
    %111 = vmatpush1.msra.mxu0 0.0
    %112 = vmatprep.subr.mxu0 0.0
    %113 = vmatpush1.msra.mxu0 0.0
    %114 = vmatprep.subr.mxu0 0.0
    %115 = vmatpush1.msra.mxu0 0.0
    %116 = vmatprep.subr.mxu0 0.0
    %117 = vmatpush1.msra.mxu0 0.0
    %118 = vmatprep.subr.mxu0 0.0
    %119 = vmatpush1.msra.mxu0 0.0
    %120 = vmatprep.subr.mxu0 0.0
    %121 = vmatpush1.msra.mxu0 0.0
    %122 = vmatprep.subr.mxu0 0.0
    %123 = vmatpush1.msra.mxu0 0.0
    %124 = vmatprep.subr.mxu0 0.0
    %125 = vmatpush1.msra.mxu0 0.0
    %126 = vmatprep.subr.mxu0 0.0
    %127 = vmatpush1.msra.mxu0 0.0
    %128 = vmatprep.subr.mxu0 0.0
    %129 = vmatpush1.msra.mxu0 0.0
    %130 = vmatprep.subr.mxu0 0.0
    %131 = vmatpush1.msra.mxu0 0.0
    %132 = vmatprep.subr.mxu0 0.0
    %133 = vmatpush1.msra.mxu0 0.0
    %134 = vmatprep.subr.mxu0 0.0
    %135 = vmatpush1.msra.mxu0 0.0
    %136 = vmatprep.subr.mxu0 0.0
    %137 = vmatpush1.msra.mxu0 0.0
    %138 = vmatprep.subr.mxu0 0.0
    %139 = vmatpush1.msra.mxu0 0.0
    %140 = vmatprep.mubr.f32.mxu0 0.0
    %141 = vmatmul.mubr.f32.gmra.mrb[0].mxu0 %v74
    %v142 = vpop.f32.mrb[0].mxu0
    %v143 = vadd.f32 %v70, %v142
    %v144 = vpop.f32.mrb[0].mxu0
    %145 = vdwg.mxu0
    %v146 = vmul.f32 %v143, %v143
    %v147 = vsel %vm72, %v146, 0.0
    %148 = vadd.xlane.f32.xlu0 %v147
    %v149 = vpop.xlane.xlu0 %148
    %v150 = vmax.f32 %v149, 1e-24
    %v151 = vrsqrt.pop %v150
    %v152 = vmul.f32 %v143, %v151
    %v153 = vld [vmem:[#allocation7] sm:$0xff]
    %v154 = vld [vmem:[#allocation7 + $0x8] sm:$0xff]
    %v155 = vld [vmem:[#allocation7 + $0x10] sm:$0xff]
    %v156 = vld [vmem:[#allocation7 + $0x18] sm:$0xff]
    %v157 = vld [vmem:[%s4] sm:$0x1]
    %v159 = vlaneseq
    %v160 = vshrl.u32 %v159, 7
    %v161 = vsub.s32 0, %v160
    %v162 = vrot.slane %v157, %v161
    %v165 = vsel %vm72, %v152, 0
    %167 = vmatprep.subr.mxu0 0.0
    %168 = vmatpush1.msra.mxu0 %v153
    %169 = vmatprep.subr.mxu0 0.0
    %170 = vmatpush1.msra.mxu0 %v154
    %171 = vmatprep.subr.mxu0 0.0
    %172 = vmatpush1.msra.mxu0 %v155
    %173 = vmatprep.subr.mxu0 0.0
    %174 = vmatpush1.msra.mxu0 %v156
    %175 = vmatprep.subr.mxu0 0.0
    %176 = vmatpush1.msra.mxu0 0.0
    %177 = vmatprep.subr.mxu0 0.0
    %178 = vmatpush1.msra.mxu0 0.0
    %179 = vmatprep.subr.mxu0 0.0
    %180 = vmatpush1.msra.mxu0 0.0
    %181 = vmatprep.subr.mxu0 0.0
    %182 = vmatpush1.msra.mxu0 0.0
    %183 = vmatprep.subr.mxu0 0.0
    %184 = vmatpush1.msra.mxu0 0.0
    %185 = vmatprep.subr.mxu0 0.0
    %186 = vmatpush1.msra.mxu0 0.0
    %187 = vmatprep.subr.mxu0 0.0
    %188 = vmatpush1.msra.mxu0 0.0
    %189 = vmatprep.subr.mxu0 0.0
    %190 = vmatpush1.msra.mxu0 0.0
    %191 = vmatprep.subr.mxu0 0.0
    %192 = vmatpush1.msra.mxu0 0.0
    %193 = vmatprep.subr.mxu0 0.0
    %194 = vmatpush1.msra.mxu0 0.0
    %195 = vmatprep.subr.mxu0 0.0
    %196 = vmatpush1.msra.mxu0 0.0
    %197 = vmatprep.subr.mxu0 0.0
    %198 = vmatpush1.msra.mxu0 0.0
    %199 = vmatprep.subr.mxu0 0.0
    %200 = vmatpush1.msra.mxu0 0.0
    %201 = vmatprep.subr.mxu0 0.0
    %202 = vmatpush1.msra.mxu0 0.0
    %203 = vmatprep.subr.mxu0 0.0
    %204 = vmatpush1.msra.mxu0 0.0
    %205 = vmatprep.subr.mxu0 0.0
    %206 = vmatpush1.msra.mxu0 0.0
    %207 = vmatprep.subr.mxu0 0.0
    %208 = vmatpush1.msra.mxu0 0.0
    %209 = vmatprep.subr.mxu0 0.0
    %210 = vmatpush1.msra.mxu0 0.0
    %211 = vmatprep.subr.mxu0 0.0
    %212 = vmatpush1.msra.mxu0 0.0
    %213 = vmatprep.subr.mxu0 0.0
    %214 = vmatpush1.msra.mxu0 0.0
    %215 = vmatprep.subr.mxu0 0.0
    %216 = vmatpush1.msra.mxu0 0.0
    %217 = vmatprep.subr.mxu0 0.0
    %218 = vmatpush1.msra.mxu0 0.0
    %219 = vmatprep.subr.mxu0 0.0
    %220 = vmatpush1.msra.mxu0 0.0
    %221 = vmatprep.subr.mxu0 0.0
    %222 = vmatpush1.msra.mxu0 0.0
    %223 = vmatprep.subr.mxu0 0.0
    %224 = vmatpush1.msra.mxu0 0.0
    %225 = vmatprep.subr.mxu0 0.0
    %226 = vmatpush1.msra.mxu0 0.0
    %227 = vmatprep.subr.mxu0 0.0
    %228 = vmatpush1.msra.mxu0 0.0
    %229 = vmatprep.subr.mxu0 0.0
    %230 = vmatpush1.msra.mxu0 0.0
    %231 = vmatprep.mubr.f32.mxu0 0.0
    %232 = vmatmul.mubr.f32.gmra.mrb[0].mxu0 %v165
    %v233 = vpop.f32.mrb[0].mxu0
    %v234 = vadd.f32 %v162, %v233
    %v235 = vpop.f32.mrb[0].mxu0
    %236 = vdwg.mxu0
    %237 = vst [vmem:[#allocation8] sm:$0xff] %v234
    // Predicated region
    $region34: #{tpu_custom_call.1} parent=1 // pred_check
      _
    $region35: #{tpu_custom_call.1} parent=1 // pred_check_branch
      %239 = sbr.rel (0) target = $region37
    $region36: #{tpu_custom_call.1} parent=1 // pred_region
      %s241 = ssub.s32 128, 128
      %242 = vsyncadd [#allocation4], %s241
      %s244 = sshll.u32 [#allocation8], 4
      %s245 = int_to_ptr.vmem [resolvable:$true] %s244
      %247 = dma.vmem_to_hbm [thread:$0]  %s245, 128, %s5, [#allocation4]
    $region37: #{tpu_custom_call.1} parent=1 // pred_fallthru
      _
    // Predicated region
    $region38: #{tpu_custom_call.1} parent=1 // pred_check
      _
    $region39: #{tpu_custom_call.1} parent=1 // pred_check_branch
      %249 = sbr.rel (0) target = $region41
    $region40: #{tpu_custom_call.1} parent=1 // pred_region
      %250 = dma.done [#allocation4], 128
    $region41: #{tpu_custom_call.1} parent=1 // pred_fallthru
      _
    %251 = vsyncpa [#allocation3], 1
    %252 = vsyncpa [#allocation6], 1
    %253 = vsyncpa [#allocation4], 1

</llo_original>
